<compile_context>
chip_gen: v6e
topology: v6e:2x2x1
jax: 0.10.0
libtpu: 0.0.40
codegen_flags: <defaults>
</compile_context>

<pallas_src>
import jax
import jax.numpy as jnp
from jax.experimental import pallas as pl
from jax.experimental.pallas import tpu as pltpu


_INV_SQRT2 = 0.7071067811865476


def _round_up(x, m):
    return ((x + m - 1) // m) * m


def _erf_f32(x):
    """float32-accurate erf (Abramowitz & Stegun 7.1.26, |err| <= 1.5e-7).

    Uses only mul/add/exp/select + an EUP reciprocal so it lowers cleanly on
    the TPU VPU/EUP (no erf primitive needed).
    """
    a1, a2, a3, a4, a5 = (0.254829592, -0.284496736, 1.421413741,
                          -1.453152027, 1.061405429)
    p = 0.3275911
    ax = jnp.abs(x)
    # EUP reciprocal (approx) instead of a VALU divide; error ~1e-3 relative in
    # t, far below the bf16-operand error budget of this kernel.
    t = pl.reciprocal(1.0 + p * ax, approx=True)
    poly = t * (a1 + t * (a2 + t * (a3 + t * (a4 + t * a5))))
    y = 1.0 - poly * jnp.exp(-ax * ax)
    return jnp.where(x >= 0.0, y, -y)


def _gelu_exact(x):
    # Matches PyTorch nn.GELU() default (exact, erf-based).
    return 0.5 * x * (1.0 + _erf_f32(x * _INV_SQRT2))


def _mlp_kernel(x_ref, w1_ref, b1_ref, w2_ref, b2_ref, o_ref, acc_ref):
    # Grid: (i over M tiles [parallel], j over F chunks [arbitrary/reduction]).
    # x_ref : (TM, E)  bf16 token tile        (resident across j for fixed i)
    # w1_ref: (E, Fc)  bf16 streamed chunk    b1_ref: (1, Fc) f32 chunk
    # w2_ref: (Fc, E)  bf16 streamed chunk    b2_ref: (1, E)  f32 resident
    # o_ref : (TM, E)  output tile            acc_ref: (TM, E) f32 scratch
    j = pl.program_id(1)

    @pl.when(j == 0)
    def _init():
        acc_ref[...] = jnp.zeros_like(acc_ref)

    h = jnp.dot(x_ref[...], w1_ref[...],
                preferred_element_type=jnp.float32)      # MXU, f32 acc
    h = h + b1_ref[...]                                  # f32 VPU
    h = _gelu_exact(h)                                   # f32 VPU/EUP
    # TODO(synk): nn.Dropout(0.1) is identity at inference; a training-mode
    # kernel would draw masks here via pltpu.prng_seed + pltpu.stateful_bernoulli.
    acc_ref[...] += jnp.dot(h.astype(w2_ref.dtype), w2_ref[...],
                            preferred_element_type=jnp.float32)  # MXU, f32 acc

    @pl.when(j == pl.num_programs(1) - 1)
    def _finalize():
        o_ref[...] = (acc_ref[...] + b2_ref[...]).astype(o_ref.dtype)


def _default_vmem_limit():
    try:
        cap = pltpu.get_tpu_info().vmem_capacity_bytes
    except Exception:
        cap = 64 * 1024 * 1024          # conservative (v7x per-TC) fallback
    # ~75% of physical, capped at 112 MiB: ~96-112 MiB on v5e/v6e (128 MiB),
    # ~48 MiB on v7x (64 MiB per TC).
    return min((cap * 3) // 4, 112 * 1024 * 1024)


def mlp_forward(x, fc1_weight, fc1_bias, fc2_weight, fc2_bias, *,
                block_m=512, block_f=2048, compute_dtype=jnp.bfloat16,
                vmem_limit_bytes=None):
    """Transformer MLP forward (inference).

    x          : (B, S, E)
    fc1_weight : (F, E)  -- PyTorch nn.Linear(E, F) layout
    fc1_bias   : (F,)
    fc2_weight : (E, F)  -- PyTorch nn.Linear(F, E) layout
    fc2_bias   : (E,)
    returns    : (B, S, E), dtype of x
    """
    B, S, E = x.shape
    F = fc1_weight.shape[0]
    M = B * S
    out_dtype = x.dtype

    # Flatten batch+seq into the matmul M dimension (free row-major reshape)
    # and feed the MXU bf16 operands (f32 accumulate inside the kernel).
    x_flat = x.reshape(M, E).astype(compute_dtype)

    # M tiling: NO host-side pad/slice of the activations.  The ragged last
    # block (if any) is handled by Pallas: rows are independent, OOB rows read
    # garbage and their stores are masked.  block_m=512 suits v5e/v6e; on v7x
    # the tighter vmem_limit below keeps the footprint in 64 MiB either way.
    tm = M if M <= block_m else block_m          # multiple of 8 or == M
    grid_m = pl.cdiv(M, tm)

    # F chunking: stream W1/W2 instead of keeping them resident, bound the
    # (TM, Fc) intermediate.  Fc is a multiple of 128; F is zero-padded up to a
    # multiple of Fc (padded columns of W1 / entries of b1 / rows of W2 are
    # zero, so padded chunks contribute exactly zero to the accumulator).
    fc = min(block_f, _round_up(F, 128))
    f_pad = _round_up(F, fc)
    grid_f = f_pad // fc

    w1 = fc1_weight.T.astype(compute_dtype)               # (E, F)
    w2 = fc2_weight.T.astype(compute_dtype)               # (F, E)
    b1 = fc1_bias.reshape(1, F).astype(jnp.float32)
    b2 = fc2_bias.reshape(1, E).astype(jnp.float32)
    if f_pad != F:
        w1 = jnp.pad(w1, ((0, 0), (0, f_pad - F)))
        b1 = jnp.pad(b1, ((0, 0), (0, f_pad - F)))
        w2 = jnp.pad(w2, ((0, f_pad - F), (0, 0)))

    if vmem_limit_bytes is None:
        vmem_limit_bytes = _default_vmem_limit()

    # NOTE: for the demo shape E=32 the x/out last dim is lane-sparse (32 of
    # 128 lanes -> masked stores).  Real transformer E >= 128 makes this moot;
    # if production E < 128, fold heads / pad E to 128 in the caller.

    cbytes = jnp.dtype(compute_dtype).itemsize
    flops = 4 * M * E * F                                  # two matmuls
    bytes_accessed = (M * E * (cbytes + jnp.dtype(out_dtype).itemsize)
                      + grid_m * 2 * E * f_pad * cbytes    # streamed W1/W2
                      + 4 * (E + f_pad))                   # f32 biases

    out = pl.pallas_call(
        _mlp_kernel,
        out_shape=jax.ShapeDtypeStruct((M, E), out_dtype),
        grid_spec=pltpu.PrefetchScalarGridSpec(
            num_scalar_prefetch=0,
            grid=(grid_m, grid_f),                # reduction (F) axis last
            in_specs=[
                pl.BlockSpec((tm, E), lambda i, j: (i, 0)),   # x tile (held across j)
                pl.BlockSpec((E, fc), lambda i, j: (0, j)),   # W1 chunk (streamed)
                pl.BlockSpec((1, fc), lambda i, j: (0, j)),   # b1 chunk
                pl.BlockSpec((fc, E), lambda i, j: (j, 0)),   # W2 chunk (streamed)
                pl.BlockSpec((1, E), lambda i, j: (0, 0)),    # b2 (resident)
            ],
            out_specs=pl.BlockSpec((tm, E), lambda i, j: (i, 0)),
            scratch_shapes=[pltpu.VMEM((tm, E), jnp.float32)],  # f32 accumulator
        ),
        compiler_params=pltpu.CompilerParams(
            dimension_semantics=("parallel", "arbitrary"),
            vmem_limit_bytes=int(vmem_limit_bytes),
        ),
        cost_estimate=pl.CostEstimate(
            flops=flops,
            transcendentals=M * f_pad,          # one exp (+ EUP rcp) per GELU elem
            bytes_accessed=int(bytes_accessed),
        ),
    )(x_flat, w1, b1, w2, b2)

    return out.reshape(B, S, E)


if __name__ == "__main__":
    # Small shapes consistent with the module: embedding_dim=32, mlp_dim=128,
    # batch=2, seq=8.
    B, S = 2, 8
    E, F = 32, 128

    key = jax.random.PRNGKey(0)
    kx, k1w, k1b, k2w, k2b = jax.random.split(key, 5)

    x = jax.random.normal(kx, (B, S, E), dtype=jnp.float32)
    fc1_weight = jax.random.normal(k1w, (F, E), dtype=jnp.float32) * 0.05
    fc1_bias = jax.random.normal(k1b, (F,), dtype=jnp.float32) * 0.05
    fc2_weight = jax.random.normal(k2w, (E, F), dtype=jnp.float32) * 0.05
    fc2_bias = jax.random.normal(k2b, (E,), dtype=jnp.float32) * 0.05

    out = mlp_forward(x, fc1_weight, fc1_bias, fc2_weight, fc2_bias)
    out = jax.block_until_ready(out)

    # Plain-JAX f32 reference with exact (erf) GELU == PyTorch nn.GELU() default.
    xf = x.reshape(B * S, E)
    h = jnp.dot(xf, fc1_weight.T, precision=jax.lax.Precision.HIGHEST) + fc1_bias
    h = 0.5 * h * (1.0 + jax.scipy.special.erf(h / jnp.sqrt(2.0)))
    ref = (jnp.dot(h, fc2_weight.T, precision=jax.lax.Precision.HIGHEST)
           + fc2_bias).reshape(B, S, E)

    assert out.shape == (B, S, E)
    max_err = float(jnp.max(jnp.abs(out.astype(jnp.float32) - ref)))
    # bf16 MXU operands with f32 accumulate/epilogue: loosened tolerance.
    assert jnp.allclose(out.astype(jnp.float32), ref, atol=2e-2, rtol=2e-2), max_err

    print("KERNEL_OK")
</pallas_src>

<mosaic_0001>
module attributes {stable_mosaic.version = 11 : i64} {
  func.func @_mlp_kernel(%arg0: i32, %arg1: i32, %arg2: memref<16x32xbf16, #tpu.memory_space<vmem>>, %arg3: memref<32x128xbf16, #tpu.memory_space<vmem>>, %arg4: memref<1x128xf32, #tpu.memory_space<vmem>>, %arg5: memref<128x32xbf16, #tpu.memory_space<vmem>>, %arg6: memref<1x32xf32, #tpu.memory_space<vmem>>, %arg7: memref<16x32xf32, #tpu.memory_space<vmem>>, %arg8: memref<16x32xf32, #tpu.memory_space<vmem>>) attributes {dimension_semantics = [#tpu.dimension_semantics<parallel>, #tpu.dimension_semantics<arbitrary>], iteration_bounds = array<i64: 1, 1>, scalar_prefetch = 0 : i64, scratch_operands = 1 : i64, tpu.core_type = #tpu.core_type<tc>, window_params = [{transform_indices = @transform_0, window_bounds = array<i64: 16, 32>}, {transform_indices = @transform_1, window_bounds = array<i64: 32, 128>}, {transform_indices = @transform_2, window_bounds = array<i64: 1, 128>}, {transform_indices = @transform_3, window_bounds = array<i64: 128, 32>}, {pipeline_mode = #tpu.pipeline_mode<synchronous>, transform_indices = @transform_4, window_bounds = array<i64: 1, 32>}, {transform_indices = @transform_5, window_bounds = array<i64: 16, 32>}]} {
    %c0_i32 = arith.constant 0 : i32
    %0 = arith.cmpi eq, %arg1, %c0_i32 : i32
    %1 = arith.extui %0 : i1 to i32
    %c0_i32_0 = arith.constant 0 : i32
    %2 = arith.cmpi ne, %1, %c0_i32_0 : i32
    scf.if %2 {
      %cst_29 = arith.constant 0.000000e+00 : f32
      %57 = vector.broadcast %cst_29 : f32 to vector<16x32xf32>
      %c0_30 = arith.constant 0 : index
      %c0_31 = arith.constant 0 : index
      %58 = vector.load %arg8[%c0_30, %c0_31] : memref<16x32xf32, #tpu.memory_space<vmem>>, vector<16x32xf32>
      tpu.vector_store %arg8[%c0_30, %c0_31], %57 {strides = array<i32>} : memref<16x32xf32, #tpu.memory_space<vmem>>, vector<16x32xf32>,
    } else {
    }
    %c0 = arith.constant 0 : index
    %c0_1 = arith.constant 0 : index
    %3 = vector.load %arg2[%c0, %c0_1] : memref<16x32xbf16, #tpu.memory_space<vmem>>, vector<16x32xbf16>
    %c0_2 = arith.constant 0 : index
    %c0_3 = arith.constant 0 : index
    %4 = vector.load %arg3[%c0_2, %c0_3] : memref<32x128xbf16, #tpu.memory_space<vmem>>, vector<32x128xbf16>
    %cst = arith.constant dense<0.000000e+00> : vector<16x128xf32>
    %5 = tpu.matmul %3, %4, %cst {dimension_numbers = #tpu.dot_dimension_numbers<[1], [0], [0], [1], [0, 0, 1, 1], [], []>} : vector<16x32xbf16>, vector<32x128xbf16>, vector<16x128xf32> -> vector<16x128xf32>
    %c0_4 = arith.constant 0 : index
    %c0_5 = arith.constant 0 : index
    %6 = vector.load %arg4[%c0_4, %c0_5] : memref<1x128xf32, #tpu.memory_space<vmem>>, vector<1x128xf32>
    %7 = vector.broadcast %6 : vector<1x128xf32> to vector<16x128xf32>
    %8 = arith.addf %5, %7 : vector<16x128xf32>
    %cst_6 = arith.constant 5.000000e-01 : f32
    %9 = vector.broadcast %cst_6 : f32 to vector<16x128xf32>
    %10 = arith.mulf %9, %8 : vector<16x128xf32>
    %cst_7 = arith.constant 0.707106769 : f32
    %11 = vector.broadcast %cst_7 : f32 to vector<16x128xf32>
    %12 = arith.mulf %8, %11 : vector<16x128xf32>
    %13 = math.absf %12 : vector<16x128xf32>
    %cst_8 = arith.constant 0.327591091 : f32
    %14 = vector.broadcast %cst_8 : f32 to vector<16x128xf32>
    %15 = arith.mulf %14, %13 : vector<16x128xf32>
    %cst_9 = arith.constant 1.000000e+00 : f32
    %16 = vector.broadcast %cst_9 : f32 to vector<16x128xf32>
    %17 = arith.addf %16, %15 : vector<16x128xf32>
    %18 = tpu.reciprocal %17 {approx = true} : vector<16x128xf32> -> vector<16x128xf32>
    %cst_10 = arith.constant 1.06140542 : f32
    %19 = vector.broadcast %cst_10 : f32 to vector<16x128xf32>
    %20 = arith.mulf %18, %19 : vector<16x128xf32>
    %cst_11 = arith.constant -1.45315206 : f32
    %21 = vector.broadcast %cst_11 : f32 to vector<16x128xf32>
    %22 = arith.addf %21, %20 : vector<16x128xf32>
    %23 = arith.mulf %18, %22 : vector<16x128xf32>
    %cst_12 = arith.constant 1.42141378 : f32
    %24 = vector.broadcast %cst_12 : f32 to vector<16x128xf32>
    %25 = arith.addf %24, %23 : vector<16x128xf32>
    %26 = arith.mulf %18, %25 : vector<16x128xf32>
    %cst_13 = arith.constant -0.284496725 : f32
    %27 = vector.broadcast %cst_13 : f32 to vector<16x128xf32>
    %28 = arith.addf %27, %26 : vector<16x128xf32>
    %29 = arith.mulf %18, %28 : vector<16x128xf32>
    %cst_14 = arith.constant 0.254829586 : f32
    %30 = vector.broadcast %cst_14 : f32 to vector<16x128xf32>
    %31 = arith.addf %30, %29 : vector<16x128xf32>
    %32 = arith.mulf %18, %31 : vector<16x128xf32>
    %cst_15 = arith.constant 0.000000e+00 : f32
    %33 = vector.broadcast %cst_15 : f32 to vector<16x128xf32>
    %34 = arith.subf %33, %13 : vector<16x128xf32>
    %35 = arith.mulf %34, %13 : vector<16x128xf32>
    %36 = math.exp %35 : vector<16x128xf32>
    %37 = arith.mulf %32, %36 : vector<16x128xf32>
    %cst_16 = arith.constant 1.000000e+00 : f32
    %38 = vector.broadcast %cst_16 : f32 to vector<16x128xf32>
    %39 = arith.subf %38, %37 : vector<16x128xf32>
    %cst_17 = arith.constant 0.000000e+00 : f32
    %40 = vector.broadcast %cst_17 : f32 to vector<16x128xf32>
    %41 = arith.cmpf oge, %12, %40 : vector<16x128xf32>
    %cst_18 = arith.constant 0.000000e+00 : f32
    %42 = vector.broadcast %cst_18 : f32 to vector<16x128xf32>
    %43 = arith.subf %42, %39 : vector<16x128xf32>
    %44 = arith.select %41, %39, %43 : vector<16x128xi1>, vector<16x128xf32>
    %cst_19 = arith.constant 1.000000e+00 : f32
    %45 = vector.broadcast %cst_19 : f32 to vector<16x128xf32>
    %46 = arith.addf %45, %44 : vector<16x128xf32>
    %47 = arith.mulf %10, %46 : vector<16x128xf32>
    %c0_20 = arith.constant 0 : index
    %c0_21 = arith.constant 0 : index
    %48 = vector.load %arg8[%c0_20, %c0_21] : memref<16x32xf32, #tpu.memory_space<vmem>>, vector<16x32xf32>
    %49 = arith.truncf %47 : vector<16x128xf32> to vector<16x128xbf16>
    %c0_22 = arith.constant 0 : index
    %c0_23 = arith.constant 0 : index
    %50 = vector.load %arg5[%c0_22, %c0_23] : memref<128x32xbf16, #tpu.memory_space<vmem>>, vector<128x32xbf16>
    %cst_24 = arith.constant dense<0.000000e+00> : vector<16x32xf32>
    %51 = tpu.matmul %49, %50, %cst_24 {dimension_numbers = #tpu.dot_dimension_numbers<[1], [0], [0], [1], [0, 0, 1, 1], [], []>} : vector<16x128xbf16>, vector<128x32xbf16>, vector<16x32xf32> -> vector<16x32xf32>
    %52 = arith.addf %48, %51 : vector<16x32xf32>
    %c0_25 = arith.constant 0 : index
    %c0_26 = arith.constant 0 : index
    %53 = vector.load %arg8[%c0_25, %c0_26] : memref<16x32xf32, #tpu.memory_space<vmem>>, vector<16x32xf32>
    tpu.vector_store %arg8[%c0_25, %c0_26], %52 {strides = array<i32>} : memref<16x32xf32, #tpu.memory_space<vmem>>, vector<16x32xf32>,
    %c0_i32_27 = arith.constant 0 : i32
    %54 = arith.cmpi eq, %arg1, %c0_i32_27 : i32
    %55 = arith.extui %54 : i1 to i32
    %c0_i32_28 = arith.constant 0 : i32
    %56 = arith.cmpi ne, %55, %c0_i32_28 : i32
    scf.if %56 {
      %c0_29 = arith.constant 0 : index
      %c0_30 = arith.constant 0 : index
      %57 = vector.load %arg8[%c0_29, %c0_30] : memref<16x32xf32, #tpu.memory_space<vmem>>, vector<16x32xf32>
      %c0_31 = arith.constant 0 : index
      %c0_32 = arith.constant 0 : index
      %58 = vector.load %arg6[%c0_31, %c0_32] : memref<1x32xf32, #tpu.memory_space<vmem>>, vector<1x32xf32>
      %59 = vector.broadcast %58 : vector<1x32xf32> to vector<16x32xf32>
      %60 = arith.addf %57, %59 : vector<16x32xf32>
      %c0_33 = arith.constant 0 : index
      %c0_34 = arith.constant 0 : index
      %61 = vector.load %arg7[%c0_33, %c0_34] : memref<16x32xf32, #tpu.memory_space<vmem>>, vector<16x32xf32>
      tpu.vector_store %arg7[%c0_33, %c0_34], %60 {strides = array<i32>} : memref<16x32xf32, #tpu.memory_space<vmem>>, vector<16x32xf32>,
    } else {
    }
    return
  }
  func.func @transform_0(%arg0: i32, %arg1: i32) -> (i32, i32) {
    %c0_i32 = arith.constant 0 : i32
    %c0_i32_0 = arith.constant 0 : i32
    return %arg0, %c0_i32 : i32, i32
  }
  func.func @transform_1(%arg0: i32, %arg1: i32) -> (i32, i32) {
    %c0_i32 = arith.constant 0 : i32
    %c0_i32_0 = arith.constant 0 : i32
    return %c0_i32, %arg1 : i32, i32
  }
  func.func @transform_2(%arg0: i32, %arg1: i32) -> (i32, i32) {
    %c0_i32 = arith.constant 0 : i32
    %c0_i32_0 = arith.constant 0 : i32
    return %c0_i32, %arg1 : i32, i32
  }
  func.func @transform_3(%arg0: i32, %arg1: i32) -> (i32, i32) {
    %c0_i32 = arith.constant 0 : i32
    %c0_i32_0 = arith.constant 0 : i32
    return %arg1, %c0_i32 : i32, i32
  }
  func.func @transform_4(%arg0: i32, %arg1: i32) -> (i32, i32) {
    %c0_i32 = arith.constant 0 : i32
    %c0_i32_0 = arith.constant 0 : i32
    %c0_i32_1 = arith.constant 0 : i32
    return %c0_i32, %c0_i32_0 : i32, i32
  }
  func.func @transform_5(%arg0: i32, %arg1: i32) -> (i32, i32) {
    %c0_i32 = arith.constant 0 : i32
    %c0_i32_0 = arith.constant 0 : i32
    return %arg0, %c0_i32 : i32, i32
  }
}

</mosaic_0001>

<llo_original>
// kernel: tpu_custom_call.1
$region0: #{tpu_custom_call.1}
  #allocation0 [shape = 'u32[]', space=smem, size = 0x4, offset = 0x4, fixed_abs, tag = 'smem constant byte address 0x4 - core index']
  #allocation1 [shape = 'u32[144,128]{1,0:T(1,128)}', space=vmem, size = 0x12000, scoped, tag = 'internal scratch']
  #allocation2 [shape = 'f32[16,32]{1,0:T(8,128)}', space=vmem, size = 0x2000, scoped, tag = 'scratch operand']
  %s0 = inlined_call_operand.vmem [shape: bf16[16,32], index: 0, kind: input, shape index: {}]
  %s1 = inlined_call_operand.vmem [shape: bf16[32,128], index: 1, kind: input, shape index: {}]
  %s2 = inlined_call_operand.vmem [shape: f32[1,128], index: 2, kind: input, shape index: {}]
  %s3 = inlined_call_operand.vmem [shape: bf16[128,32], index: 3, kind: input, shape index: {}]
  %s4 = inlined_call_operand.vmem [shape: f32[1,32], index: 4, kind: input, shape index: {}]
  %s5 = inlined_call_operand.hbm [shape: f32[16,32], index: 5, kind: output, shape index: {}]
  %s6 = sld [smem:[#allocation0]]
  $region38: #{tpu_custom_call.1} parent=0
    _
  %s8 = ssub.s32 1, %s6
  %s9 = scalar_select 0, %s8, %s6
  $region1: #{tpu_custom_call.1} parent=0
    #allocation3 [shape = 'u8[8192]{0}', space=vmem, size = 0x2000, scoped, tag = 'output window, operand 0, single buffered']
    #allocation4 [shape = 's32[1]{0}', space=sflag, size = 0x4, scoped, tag = 'scoped memory for tpu_custom_call.1']
    %10 = vsyncpa [#allocation4], 0
    // Predicated region
    $region2: #{tpu_custom_call.1} parent=1 // pred_check
      _
    $region3: #{tpu_custom_call.1} parent=1 // pred_check_branch
      %12 = sbr.rel (0) target = $region5
    $region4: #{tpu_custom_call.1} parent=1 // pred_region
      _
    $region5: #{tpu_custom_call.1} parent=1 // pred_fallthru
      _
    // Predicated region
    $region6: #{tpu_custom_call.1} parent=1 // pred_check
      _
    $region7: #{tpu_custom_call.1} parent=1 // pred_check_branch
      %14 = sbr.rel (0) target = $region9
    $region8: #{tpu_custom_call.1} parent=1 // pred_region
      _
    $region9: #{tpu_custom_call.1} parent=1 // pred_fallthru
      _
    // Predicated region
    $region10: #{tpu_custom_call.1} parent=1 // pred_check
      _
    $region11: #{tpu_custom_call.1} parent=1 // pred_check_branch
      %16 = sbr.rel (0) target = $region13
    $region12: #{tpu_custom_call.1} parent=1 // pred_region
      _
    $region13: #{tpu_custom_call.1} parent=1 // pred_fallthru
      _
    // Predicated region
    $region14: #{tpu_custom_call.1} parent=1 // pred_check
      _
    $region15: #{tpu_custom_call.1} parent=1 // pred_check_branch
      %18 = sbr.rel (0) target = $region17
    $region16: #{tpu_custom_call.1} parent=1 // pred_region
      _
    $region17: #{tpu_custom_call.1} parent=1 // pred_fallthru
      _
    // Predicated region
    $region18: #{tpu_custom_call.1} parent=1 // pred_check
      _
    $region19: #{tpu_custom_call.1} parent=1 // pred_check_branch
      %20 = sbr.rel (0) target = $region21
    $region20: #{tpu_custom_call.1} parent=1 // pred_region
      _
    $region21: #{tpu_custom_call.1} parent=1 // pred_fallthru
      _
    %p22 = scmp.eq.s32.totalorder 0, 0
    // Predicated region
    $region22: #{tpu_custom_call.1} parent=1 // pred_check
      %p23 = pneg %p22
    $region23: #{tpu_custom_call.1} parent=1 // pred_check_branch
      %25 = sbr.rel (%p23) target = $region25
    $region24: #{tpu_custom_call.1} parent=1 // pred_region
      %vm26 = vcmask 261120
      %27 = vst.msk [vmem:[#allocation2] sm:$0xff] %vm26, 0.0
      %28 = vst.msk [vmem:[#allocation2 + $0x8] sm:$0xff] %vm26, 0.0
    $region25: #{tpu_custom_call.1} parent=1 // pred_fallthru
      _
    %v29 = vld [vmem:[%s0] sm:$0xf]
    %v30 = vld [vmem:[%s0 + $0x4] sm:$0xf]
    %v31 = vld [vmem:[%s1] sm:$0xf]
    %v32 = vld [vmem:[%s1 + $0x4] sm:$0xf]
    %v33 = vld [vmem:[%s1 + $0x8] sm:$0xf]
    %v34 = vld [vmem:[%s1 + $0xc] sm:$0xf]
    %v35 = vld [vmem:[%s2] sm:$0x1]
    %v37 = vlaneseq
    %v38 = vshrl.u32 %v37, 7
    %v39 = vsub.s32 0, %v38
    %v40 = vrot.slane %v35, %v39
    %v44 = vunpack.c.l.b16 %v29
    %v45 = vunpack.c.l.b16 %v30
    %v46 = vpack.c.b16 %v45, %v44
    %v51 = vunpack.c.l.b16 %v31
    %v52 = vunpack.c.l.b16 %v32
    %v53 = vunpack.c.l.b16 %v33
    %v54 = vunpack.c.l.b16 %v34
    %v55 = vpack.c.b16 %v52, %v51
    %v56 = vpack.c.b16 %v54, %v53
    %vm59 = vcmask 261120
    %v61 = vsel %vm59, %v46, 0
    %63 = vmatprep.subr.bf16.mxu0 0
    %64 = vmatpush1.bf16.msra.mxu0 0
    %65 = vmatprep.subr.bf16.mxu0 0
    %66 = vmatpush1.bf16.msra.mxu0 0
    %67 = vmatprep.subr.bf16.mxu0 0
    %68 = vmatpush1.bf16.msra.mxu0 0
    %69 = vmatprep.subr.bf16.mxu0 0
    %70 = vmatpush1.bf16.msra.mxu0 0
    %71 = vmatprep.subr.bf16.mxu0 0
    %72 = vmatpush1.bf16.msra.mxu0 0
    %73 = vmatprep.subr.bf16.mxu0 0
    %74 = vmatpush1.bf16.msra.mxu0 0
    %75 = vmatprep.subr.bf16.mxu0 0
    %76 = vmatpush1.bf16.msra.mxu0 %v56
    %77 = vmatprep.subr.bf16.mxu0 0
    %78 = vmatpush1.bf16.msra.mxu0 %v55
    %79 = vmatprep.subr.bf16.mxu0 0
    %80 = vmatpush2.bf16.msra.mxu0 0
    %81 = vmatprep.subr.bf16.mxu0 0
    %82 = vmatpush2.bf16.msra.mxu0 0
    %83 = vmatprep.subr.bf16.mxu0 0
    %84 = vmatpush2.bf16.msra.mxu0 0
    %85 = vmatprep.subr.bf16.mxu0 0
    %86 = vmatpush2.bf16.msra.mxu0 0
    %87 = vmatprep.subr.bf16.mxu0 0
    %88 = vmatpush2.bf16.msra.mxu0 0
    %89 = vmatprep.subr.bf16.mxu0 0
    %90 = vmatpush2.bf16.msra.mxu0 0
    %91 = vmatprep.subr.bf16.mxu0 0
    %92 = vmatpush2.bf16.msra.mxu0 0
    %93 = vmatprep.subr.bf16.mxu0 0
    %94 = vmatpush2.bf16.msra.mxu0 0
    %95 = vmatprep.mubr.bf16.mxu0 0
    %96 = vmatmul.mubr.bf16.gmra.mxu0 %v61
    %v97 = vpop.f32.mrf.mxu0
    %v98 = vadd.f32 %v40, %v97
    %v99 = vpop.f32.mrf.mxu0
    %v100 = vpop.f32.mrf.mxu0
    %v101 = vadd.f32 %v40, %v100
    %v102 = vpop.f32.mrf.mxu0
    %103 = vdwg.mxu0
    %v104 = vmul.f32 %v98, 0.5
    %v105 = vmul.f32 %v101, 0.5
    %v106 = vmul.f32 %v98, 0.70710677
    %v107 = vmul.f32 %v101, 0.70710677
    %v108 = vand.u32 2147483647, %v106
    %v109 = vand.u32 2147483647, %v107
    %v110 = vmul.f32 %v108, 0.3275911
    %v111 = vmul.f32 %v109, 0.3275911
    %v112 = vadd.f32 %v110, 1.0
    %v113 = vadd.f32 %v111, 1.0
    %v114 = vrcp.pop %v112
    %v115 = vrcp.pop %v113
    %v116 = vmul.f32 %v114, 1.0614054
    %v117 = vmul.f32 %v115, 1.0614054
    %v118 = vadd.f32 %v116, -1.4531521
    %v119 = vadd.f32 %v117, -1.4531521
    %v120 = vmul.f32 %v114, %v118
    %v121 = vmul.f32 %v115, %v119
    %v122 = vadd.f32 %v120, 1.4214138
    %v123 = vadd.f32 %v121, 1.4214138
    %v124 = vmul.f32 %v114, %v122
    %v125 = vmul.f32 %v115, %v123
    %v126 = vadd.f32 %v124, -0.28449672
    %v127 = vadd.f32 %v125, -0.28449672
    %v128 = vmul.f32 %v114, %v126
    %v129 = vmul.f32 %v115, %v127
    %v130 = vadd.f32 %v128, 0.2548296
    %v131 = vadd.f32 %v129, 0.2548296
    %v132 = vmul.f32 %v114, %v130
    %v133 = vmul.f32 %v115, %v131
    %v134 = vsub.f32 0.0, %v108
    %v135 = vsub.f32 0.0, %v109
    %v136 = vmul.f32 %v134, %v108
    %v137 = vmul.f32 %v135, %v109
    %v138 = vmul.f32 %v136, 1.442695
    %v139 = vpow.pop %v138
    %v140 = vmul.f32 %v137, 1.442695
    %v141 = vpow.pop %v140
    %v142 = vmul.f32 %v132, %v139
    %v143 = vmul.f32 %v133, %v141
    %v144 = vsub.f32 1.0, %v142
    %v145 = vsub.f32 1.0, %v143
    %vm146 = vcmp.ge.f32.partialorder %v106, 0.0
    %vm147 = vcmp.ge.f32.partialorder %v107, 0.0
    %v148 = vsub.f32 0.0, %v144
    %v149 = vsub.f32 0.0, %v145
    %v150 = vsel %vm146, %v144, %v148
    %v151 = vsel %vm147, %v145, %v149
    %v152 = vadd.f32 %v150, 1.0
    %v153 = vadd.f32 %v151, 1.0
    %v154 = vmul.f32 %v104, %v152
    %v155 = vmul.f32 %v105, %v153
    %v156 = vld [vmem:[#allocation2] sm:$0xff]
    %v157 = vld [vmem:[#allocation2 + $0x8] sm:$0xff]
    %v158 = vpack.c.bf16 %v155, %v154
    %v159 = vld [vmem:[%s3] sm:$0xf]
    %v160 = vld [vmem:[%s3 + $0x4] sm:$0xf]
    %v161 = vld [vmem:[%s3 + $0x8] sm:$0xf]
    %v162 = vld [vmem:[%s3 + $0xc] sm:$0xf]
    %v163 = vld [vmem:[%s3 + $0x10] sm:$0xf]
    %v164 = vld [vmem:[%s3 + $0x14] sm:$0xf]
    %v165 = vld [vmem:[%s3 + $0x18] sm:$0xf]
    %v166 = vld [vmem:[%s3 + $0x1c] sm:$0xf]
    %v167 = vld [vmem:[%s3 + $0x20] sm:$0xf]
    %v168 = vld [vmem:[%s3 + $0x24] sm:$0xf]
    %v169 = vld [vmem:[%s3 + $0x28] sm:$0xf]
    %v170 = vld [vmem:[%s3 + $0x2c] sm:$0xf]
    %v171 = vld [vmem:[%s3 + $0x30] sm:$0xf]
    %v172 = vld [vmem:[%s3 + $0x34] sm:$0xf]
    %v173 = vld [vmem:[%s3 + $0x38] sm:$0xf]
    %v174 = vld [vmem:[%s3 + $0x3c] sm:$0xf]
    %v191 = vunpack.c.l.b16 %v159
    %v192 = vunpack.c.l.b16 %v160
    %v193 = vunpack.c.l.b16 %v161
    %v194 = vunpack.c.l.b16 %v162
    %v195 = vunpack.c.l.b16 %v163
    %v196 = vunpack.c.l.b16 %v164
    %v197 = vunpack.c.l.b16 %v165
    %v198 = vunpack.c.l.b16 %v166
    %v199 = vunpack.c.l.b16 %v167
    %v200 = vunpack.c.l.b16 %v168
    %v201 = vunpack.c.l.b16 %v169
    %v202 = vunpack.c.l.b16 %v170
    %v203 = vunpack.c.l.b16 %v171
    %v204 = vunpack.c.l.b16 %v172
    %v205 = vunpack.c.l.b16 %v173
    %v206 = vunpack.c.l.b16 %v174
    %v207 = vpack.c.b16 %v192, %v191
    %v208 = vpack.c.b16 %v194, %v193
    %v209 = vpack.c.b16 %v196, %v195
    %v210 = vpack.c.b16 %v198, %v197
    %v211 = vpack.c.b16 %v200, %v199
    %v212 = vpack.c.b16 %v202, %v201
    %v213 = vpack.c.b16 %v204, %v203
    %v214 = vpack.c.b16 %v206, %v205
    %223 = vmatprep.subr.bf16.mxu0 0
    %224 = vmatpush1.bf16.msra.mxu0 %v214
    %225 = vmatprep.subr.bf16.mxu0 0
    %226 = vmatpush1.bf16.msra.mxu0 %v213
    %227 = vmatprep.subr.bf16.mxu0 0
    %228 = vmatpush1.bf16.msra.mxu0 %v212
    %229 = vmatprep.subr.bf16.mxu0 0
    %230 = vmatpush1.bf16.msra.mxu0 %v211
    %231 = vmatprep.subr.bf16.mxu0 0
    %232 = vmatpush1.bf16.msra.mxu0 %v210
    %233 = vmatprep.subr.bf16.mxu0 0
    %234 = vmatpush1.bf16.msra.mxu0 %v209
    %235 = vmatprep.subr.bf16.mxu0 0
    %236 = vmatpush1.bf16.msra.mxu0 %v208
    %237 = vmatprep.subr.bf16.mxu0 0
    %238 = vmatpush1.bf16.msra.mxu0 %v207
    %239 = vmatprep.subr.bf16.mxu0 0
    %240 = vmatpush2.bf16.msra.mxu0 0
    %241 = vmatprep.subr.bf16.mxu0 0
    %242 = vmatpush2.bf16.msra.mxu0 0
    %243 = vmatprep.subr.bf16.mxu0 0
    %244 = vmatpush2.bf16.msra.mxu0 0
    %245 = vmatprep.subr.bf16.mxu0 0
    %246 = vmatpush2.bf16.msra.mxu0 0
    %247 = vmatprep.subr.bf16.mxu0 0
    %248 = vmatpush2.bf16.msra.mxu0 0
    %249 = vmatprep.subr.bf16.mxu0 0
    %250 = vmatpush2.bf16.msra.mxu0 0
    %251 = vmatprep.subr.bf16.mxu0 0
    %252 = vmatpush2.bf16.msra.mxu0 0
    %253 = vmatprep.subr.bf16.mxu0 0
    %254 = vmatpush2.bf16.msra.mxu0 0
    %255 = vmatprep.mubr.bf16.mxu0 0
    %256 = vmatmul.mubr.bf16.gmra.mxu0 %v158
    %v257 = vpop.f32.mrf.mxu0
    %v258 = vadd.f32 0.0, %v257
    %v259 = vpop.f32.mrf.mxu0
    %v260 = vpop.f32.mrf.mxu0
    %v261 = vadd.f32 0.0, %v260
    %v262 = vpop.f32.mrf.mxu0
    %263 = vdwg.mxu0
    %v264 = vadd.f32 %v156, %v258
    %v265 = vadd.f32 %v157, %v261
    %266 = vst.msk [vmem:[#allocation2] sm:$0xff] %vm59, %v264
    %267 = vst.msk [vmem:[#allocation2 + $0x8] sm:$0xff] %vm59, %v265
    // Predicated region
    $region26: #{tpu_custom_call.1} parent=1 // pred_check
      %p268 = pneg %p22
    $region27: #{tpu_custom_call.1} parent=1 // pred_check_branch
      %270 = sbr.rel (%p268) target = $region29
    $region28: #{tpu_custom_call.1} parent=1 // pred_region
      %v271 = vld [vmem:[#allocation2] sm:$0xff]
      %v272 = vld [vmem:[#allocation2 + $0x8] sm:$0xff]
      %v273 = vld [vmem:[%s4] sm:$0x1]
      %v275 = vlaneseq
      %v276 = vshrl.u32 %v275, 7
      %v277 = vsub.s32 0, %v276
      %v278 = vrot.slane %v273, %v277
      %v280 = vadd.f32 %v271, %v278
      %v281 = vadd.f32 %v272, %v278
      %282 = vst.msk [vmem:[#allocation3] sm:$0xff] %vm59, %v280
      %283 = vst.msk [vmem:[#allocation3 + $0x8] sm:$0xff] %vm59, %v281
    $region29: #{tpu_custom_call.1} parent=1 // pred_fallthru
      _
    // Predicated region
    $region30: #{tpu_custom_call.1} parent=1 // pred_check
      _
    $region31: #{tpu_custom_call.1} parent=1 // pred_check_branch
      %285 = sbr.rel (0) target = $region33
    $region32: #{tpu_custom_call.1} parent=1 // pred_region
      %s287 = ssub.s32 256, 256
      %288 = vsyncadd [#allocation4], %s287
      %s289 = sshll.u32 [#allocation3], 4
      %s290 = int_to_ptr.vmem [resolvable:$true] %s289
      %295 = dma.vmem_to_hbm [thread:$0]  %s290, 256, %s5, [#allocation4], 128, 128, 8
    $region33: #{tpu_custom_call.1} parent=1 // pred_fallthru
      _
    // Predicated region
    $region34: #{tpu_custom_call.1} parent=1 // pred_check
      _
    $region35: #{tpu_custom_call.1} parent=1 // pred_check_branch
      %297 = sbr.rel (0) target = $region37
    $region36: #{tpu_custom_call.1} parent=1 // pred_region
      %298 = dma.done [#allocation4], 256
    $region37: #{tpu_custom_call.1} parent=1 // pred_fallthru
      _
    %299 = vsyncpa [#allocation4], 1

</llo_original>
